<compile_context>
chip_gen: v5e
topology: v5e:2x2
jax: 0.10.0
libtpu: 0.0.40
codegen_flags: <defaults>
</compile_context>

<pallas_src>
import functools

import jax
import jax.numpy as jnp
from jax.experimental import pallas as pl
from jax.experimental.pallas import tpu as pltpu


def gnn_mlp_kernel(x_ref, w1_ref, b1_ref, w2_ref, b2_ref, out_ref):
    """Fused Linear -> ReLU -> Linear on one tile of nodes.

    x_ref  : [tm, F]   bf16 (VMEM)
    w1_ref : [F, H]    bf16 (VMEM)  -- conv1.weight.T
    b1_ref : [1, H]    f32  (VMEM)  -- conv1.bias
    w2_ref : [H, Cp]   bf16 (VMEM)  -- conv2.weight.T, zero-padded to Cp lanes
    b2_ref : [1, Cp]   f32  (VMEM)  -- conv2.bias, zero-padded to Cp lanes
    out_ref: [tm, Cp]  bf16 (VMEM)  -- lane-dense logits slab
    """
    # Layer 1: bf16 matmul, f32 accumulate (MXU); bias + ReLU on the VPU.
    h = jnp.dot(x_ref[...], w1_ref[...], preferred_element_type=jnp.float32)
    h = jnp.maximum(h + b1_ref[...], 0.0)
    # Layer 2: cast activations to bf16 for the MXU, accumulate in f32.
    o = jnp.dot(h.astype(jnp.bfloat16), w2_ref[...],
                preferred_element_type=jnp.float32)
    out_ref[...] = (o + b2_ref[...]).astype(out_ref.dtype)


def _round_up(a: int, b: int) -> int:
    return ((a + b - 1) // b) * b


@functools.partial(jax.jit, static_argnames=("tile_m", "num_classes"))
def gnn_forward(x, w1_t, b1_row, w2_t_pad, b2_row_pad, *, tile_m=4096,
                num_classes=None):
    """x: [N, F] float32. Returns logits [N, num_classes] float32.

    w1_t / w2_t_pad must be bf16, [in, out]; w2_t_pad / b2_row_pad must be
    zero-padded to a lane-dense width (multiple of 128).
    """
    assert num_classes is not None, "num_classes must be given"
    N, F = x.shape
    H = w1_t.shape[1]
    Cp = w2_t_pad.shape[1]          # lane-dense padded class width

    # Tile choice: one big tile per grid step amortizes the ~0.35 us per-step
    # overhead.  For N <= tile_m this is a single step (no forced split on
    # single-TensorCore v5e/v6e); for large N the grid naturally has many
    # steps, which the "parallel" axis shards across v7x's two TensorCores.
    # Clamp so the double-buffered VMEM footprint (x tile + out tile, bf16,
    # x2 buffers) stays under ~12 MiB -> safe under every gen's scoped default.
    vmem_budget = 12 * 1024 * 1024
    tm_cap = max(8, (vmem_budget // (2 * 2 * (F + Cp))) // 8 * 8)
    tm = max(8, min(tile_m, tm_cap, _round_up(N, 8)))
    n_pad = _round_up(N, tm)

    x_bf16 = x.astype(jnp.bfloat16)
    if n_pad != N:
        x_bf16 = jnp.pad(x_bf16, ((0, n_pad - N), (0, 0)))

    grid = (n_pad // tm,)

    cost = pl.CostEstimate(
        flops=2 * n_pad * (F * H + H * Cp),
        transcendentals=0,
        bytes_accessed=n_pad * (F + Cp) * 2 + (F * H + H * Cp) * 2 + (H + Cp) * 4,
    )

    out = pl.pallas_call(
        gnn_mlp_kernel,
        out_shape=jax.ShapeDtypeStruct((n_pad, Cp), jnp.bfloat16),
        grid=grid,
        in_specs=[
            # Nodes tiled along the grid; weights/biases are grid-invariant
            # (same block every step, so they are only fetched once).
            pl.BlockSpec((tm, F), lambda i: (i, 0)),
            pl.BlockSpec((F, H), lambda i: (0, 0)),
            pl.BlockSpec((1, H), lambda i: (0, 0)),
            pl.BlockSpec((H, Cp), lambda i: (0, 0)),
            pl.BlockSpec((1, Cp), lambda i: (0, 0)),
        ],
        out_specs=pl.BlockSpec((tm, Cp), lambda i: (i, 0)),
        compiler_params=pltpu.CompilerParams(
            dimension_semantics=("parallel",)),
        cost_estimate=cost,
    )(x_bf16, w1_t, b1_row, w2_t_pad, b2_row_pad)

    # Strip row padding and zero-padded class lanes; restore f32 logits.
    return out[:N, :num_classes].astype(jnp.float32)


def init_linear_params(key, in_features, out_features):
    """Deterministic init mimicking torch.nn.Linear defaults
    (uniform(-1/sqrt(in), 1/sqrt(in)) for weight and bias)."""
    kw, kb = jax.random.split(key)
    bound = 1.0 / jnp.sqrt(jnp.float32(in_features))
    # PyTorch stores weight as [out, in]; transpose later for the kernel.
    w = jax.random.uniform(kw, (out_features, in_features), jnp.float32,
                           minval=-bound, maxval=bound)
    b = jax.random.uniform(kb, (out_features,), jnp.float32,
                           minval=-bound, maxval=bound)
    return w, b


if __name__ == "__main__":
    # Small, module-consistent shapes:
    #   N nodes = 16, num_features = 32, hidden = 64, num_classes = 8
    N, NUM_FEATURES, HIDDEN, NUM_CLASSES = 16, 32, 64, 8

    key = jax.random.PRNGKey(0)
    k_x, k_l1, k_l2, k_edge = jax.random.split(key, 4)

    # data.x : node feature matrix
    x = jax.random.normal(k_x, (N, NUM_FEATURES), dtype=jnp.float32)
    # data.edge_index is unused by the reference forward (kept for parity).
    edge_index = jax.random.randint(k_edge, (2, 32), 0, N, dtype=jnp.int32)
    del edge_index  # not consumed by forward()

    # conv1 = nn.Linear(num_features, 64); conv2 = nn.Linear(64, num_classes)
    w1, b1 = init_linear_params(k_l1, NUM_FEATURES, HIDDEN)
    w2, b2 = init_linear_params(k_l2, HIDDEN, NUM_CLASSES)

    # Layout plumbing (outside the kernel, done once):
    #  - pre-transpose weights to [in, out] and cast to bf16 for the MXU
    #  - zero-pad conv2 to a lane-dense (multiple-of-128) output width
    C_PAD = _round_up(NUM_CLASSES, 128)
    w1_t = w1.T.astype(jnp.bfloat16)              # [F, H]  bf16
    b1_row = b1.reshape(1, HIDDEN)                # [1, H]  f32
    w2_t_pad = (jnp.zeros((HIDDEN, C_PAD), jnp.float32)
                .at[:, :NUM_CLASSES].set(w2.T)).astype(jnp.bfloat16)
    b2_row_pad = jnp.zeros((1, C_PAD), jnp.float32).at[0, :NUM_CLASSES].set(b2)

    out = gnn_forward(x, w1_t, b1_row, w2_t_pad, b2_row_pad,
                      tile_m=4096, num_classes=NUM_CLASSES)
    out = jax.block_until_ready(out)

    # Cross-check against a plain-JAX f32 reference of the PyTorch forward.
    # Tolerance loosened for bf16 matmul inputs / bf16 output (f32 accumulate).
    ref = jnp.maximum(x @ w1.T + b1, 0.0) @ w2.T + b2
    assert out.shape == (N, NUM_CLASSES)
    assert jnp.allclose(out, ref, atol=5e-2, rtol=5e-2), "mismatch vs reference"

    print("KERNEL_OK")
</pallas_src>

<mosaic_0001>
module attributes {stable_mosaic.version = 11 : i64} {
  func.func @gnn_mlp_kernel(%arg0: i32, %arg1: memref<16x32xbf16, #tpu.memory_space<vmem>>, %arg2: memref<32x64xbf16, #tpu.memory_space<vmem>>, %arg3: memref<1x64xf32, #tpu.memory_space<vmem>>, %arg4: memref<64x128xbf16, #tpu.memory_space<vmem>>, %arg5: memref<1x128xf32, #tpu.memory_space<vmem>>, %arg6: memref<16x128xbf16, #tpu.memory_space<vmem>>) attributes {dimension_semantics = [#tpu.dimension_semantics<parallel>], iteration_bounds = array<i64: 1>, scalar_prefetch = 0 : i64, scratch_operands = 0 : i64, tpu.core_type = #tpu.core_type<tc>, window_params = [{transform_indices = @transform_0, window_bounds = array<i64: 16, 32>}, {pipeline_mode = #tpu.pipeline_mode<synchronous>, transform_indices = @transform_1, window_bounds = array<i64: 32, 64>}, {pipeline_mode = #tpu.pipeline_mode<synchronous>, transform_indices = @transform_2, window_bounds = array<i64: 1, 64>}, {pipeline_mode = #tpu.pipeline_mode<synchronous>, transform_indices = @transform_3, window_bounds = array<i64: 64, 128>}, {pipeline_mode = #tpu.pipeline_mode<synchronous>, transform_indices = @transform_4, window_bounds = array<i64: 1, 128>}, {transform_indices = @transform_5, window_bounds = array<i64: 16, 128>}]} {
    %c0 = arith.constant 0 : index
    %c0_0 = arith.constant 0 : index
    %0 = vector.load %arg1[%c0, %c0_0] : memref<16x32xbf16, #tpu.memory_space<vmem>>, vector<16x32xbf16>
    %c0_1 = arith.constant 0 : index
    %c0_2 = arith.constant 0 : index
    %1 = vector.load %arg2[%c0_1, %c0_2] : memref<32x64xbf16, #tpu.memory_space<vmem>>, vector<32x64xbf16>
    %cst = arith.constant dense<0.000000e+00> : vector<16x64xf32>
    %2 = tpu.matmul %0, %1, %cst {dimension_numbers = #tpu.dot_dimension_numbers<[1], [0], [0], [1], [0, 0, 1, 1], [], []>} : vector<16x32xbf16>, vector<32x64xbf16>, vector<16x64xf32> -> vector<16x64xf32>
    %c0_3 = arith.constant 0 : index
    %c0_4 = arith.constant 0 : index
    %3 = vector.load %arg3[%c0_3, %c0_4] : memref<1x64xf32, #tpu.memory_space<vmem>>, vector<1x64xf32>
    %4 = vector.broadcast %3 : vector<1x64xf32> to vector<16x64xf32>
    %5 = arith.addf %2, %4 : vector<16x64xf32>
    %cst_5 = arith.constant 0.000000e+00 : f32
    %6 = vector.broadcast %cst_5 : f32 to vector<16x64xf32>
    %7 = arith.maximumf %5, %6 : vector<16x64xf32>
    %8 = arith.truncf %7 : vector<16x64xf32> to vector<16x64xbf16>
    %c0_6 = arith.constant 0 : index
    %c0_7 = arith.constant 0 : index
    %9 = vector.load %arg4[%c0_6, %c0_7] : memref<64x128xbf16, #tpu.memory_space<vmem>>, vector<64x128xbf16>
    %cst_8 = arith.constant dense<0.000000e+00> : vector<16x128xf32>
    %10 = tpu.matmul %8, %9, %cst_8 {dimension_numbers = #tpu.dot_dimension_numbers<[1], [0], [0], [1], [0, 0, 1, 1], [], []>} : vector<16x64xbf16>, vector<64x128xbf16>, vector<16x128xf32> -> vector<16x128xf32>
    %c0_9 = arith.constant 0 : index
    %c0_10 = arith.constant 0 : index
    %11 = vector.load %arg5[%c0_9, %c0_10] : memref<1x128xf32, #tpu.memory_space<vmem>>, vector<1x128xf32>
    %12 = vector.broadcast %11 : vector<1x128xf32> to vector<16x128xf32>
    %13 = arith.addf %10, %12 : vector<16x128xf32>
    %14 = arith.truncf %13 : vector<16x128xf32> to vector<16x128xbf16>
    %c0_11 = arith.constant 0 : index
    %c0_12 = arith.constant 0 : index
    %15 = vector.load %arg6[%c0_11, %c0_12] : memref<16x128xbf16, #tpu.memory_space<vmem>>, vector<16x128xbf16>
    tpu.vector_store %arg6[%c0_11, %c0_12], %14 {strides = array<i32>} : memref<16x128xbf16, #tpu.memory_space<vmem>>, vector<16x128xbf16>,
    return
  }
  func.func @transform_0(%arg0: i32) -> (i32, i32) {
    %c0_i32 = arith.constant 0 : i32
    %c0_i32_0 = arith.constant 0 : i32
    return %arg0, %c0_i32 : i32, i32
  }
  func.func @transform_1(%arg0: i32) -> (i32, i32) {
    %c0_i32 = arith.constant 0 : i32
    %c0_i32_0 = arith.constant 0 : i32
    %c0_i32_1 = arith.constant 0 : i32
    return %c0_i32, %c0_i32_0 : i32, i32
  }
  func.func @transform_2(%arg0: i32) -> (i32, i32) {
    %c0_i32 = arith.constant 0 : i32
    %c0_i32_0 = arith.constant 0 : i32
    %c0_i32_1 = arith.constant 0 : i32
    return %c0_i32, %c0_i32_0 : i32, i32
  }
  func.func @transform_3(%arg0: i32) -> (i32, i32) {
    %c0_i32 = arith.constant 0 : i32
    %c0_i32_0 = arith.constant 0 : i32
    %c0_i32_1 = arith.constant 0 : i32
    return %c0_i32, %c0_i32_0 : i32, i32
  }
  func.func @transform_4(%arg0: i32) -> (i32, i32) {
    %c0_i32 = arith.constant 0 : i32
    %c0_i32_0 = arith.constant 0 : i32
    %c0_i32_1 = arith.constant 0 : i32
    return %c0_i32, %c0_i32_0 : i32, i32
  }
  func.func @transform_5(%arg0: i32) -> (i32, i32) {
    %c0_i32 = arith.constant 0 : i32
    %c0_i32_0 = arith.constant 0 : i32
    return %arg0, %c0_i32 : i32, i32
  }
}

</mosaic_0001>

<llo_original>
// kernel: gnn_forward.1
$region0: #{gnn_forward.1}
  #allocation0 [shape = 'u32[]', space=smem, size = 0x4, offset = 0x4, fixed_abs, tag = 'smem constant byte address 0x4 - core index']
  #allocation1 [shape = 'u32[72,128]{1,0:T(1,128)}', space=vmem, size = 0x9000, scoped, tag = 'internal scratch']
  %s0 = inlined_call_operand.vmem [shape: bf16[16,32], index: 0, kind: input, shape index: {}]
  %s1 = inlined_call_operand.vmem [shape: bf16[32,64], index: 1, kind: input, shape index: {}]
  %s2 = inlined_call_operand.vmem [shape: f32[1,64], index: 2, kind: input, shape index: {}]
  %s3 = inlined_call_operand.hbm [shape: bf16[64,128], index: 3, kind: input, shape index: {}]
  %s4 = inlined_call_operand.vmem [shape: f32[1,128], index: 4, kind: input, shape index: {}]
  %s5 = inlined_call_operand.vmem [shape: bf16[16,128], index: 5, kind: output, shape index: {}]
  %s6 = sld [smem:[#allocation0]]
  $region34: #{gnn_forward.1} parent=0
    _
  %s8 = ssub.s32 1, %s6
  %s9 = scalar_select 0, %s8, %s6
  $region1: #{gnn_forward.1} parent=0
    #allocation2 [shape = 'u8[16384]{0}', space=vmem, size = 0x4000, scoped, tag = 'input window, operand 3, single buffered']
    #allocation3 [shape = 's32[1]{0}', space=sflag, size = 0x4, scoped, tag = 'scoped memory for gnn_forward.1']
    %10 = vsyncpa [#allocation3], 0
    // Predicated region
    $region2: #{gnn_forward.1} parent=1 // pred_check
      _
    $region3: #{gnn_forward.1} parent=1 // pred_check_branch
      %12 = sbr.rel (0) target = $region5
    $region4: #{gnn_forward.1} parent=1 // pred_region
      _
    $region5: #{gnn_forward.1} parent=1 // pred_fallthru
      _
    // Predicated region
    $region6: #{gnn_forward.1} parent=1 // pred_check
      _
    $region7: #{gnn_forward.1} parent=1 // pred_check_branch
      %14 = sbr.rel (0) target = $region9
    $region8: #{gnn_forward.1} parent=1 // pred_region
      _
    $region9: #{gnn_forward.1} parent=1 // pred_fallthru
      _
    // Predicated region
    $region10: #{gnn_forward.1} parent=1 // pred_check
      _
    $region11: #{gnn_forward.1} parent=1 // pred_check_branch
      %16 = sbr.rel (0) target = $region13
    $region12: #{gnn_forward.1} parent=1 // pred_region
      _
    $region13: #{gnn_forward.1} parent=1 // pred_fallthru
      _
    // Predicated region
    $region14: #{gnn_forward.1} parent=1 // pred_check
      _
    $region15: #{gnn_forward.1} parent=1 // pred_check_branch
      %18 = sbr.rel (0) target = $region17
    $region16: #{gnn_forward.1} parent=1 // pred_region
      %20 = vsyncadd [#allocation3], 0
      %s21 = sshll.u32 %s3, 4
      %s22 = int_to_ptr.hbm [resolvable:$true] %s21
      %s23 = sshll.u32 [#allocation2], 4
      %s24 = int_to_ptr.vmem [resolvable:$true] %s23
      %29 = dma.hbm_to_vmem [thread:$0]  %s22, 512, %s24, [#allocation3], 64, 64, 4
    $region17: #{gnn_forward.1} parent=1 // pred_fallthru
      _
    // Predicated region
    $region18: #{gnn_forward.1} parent=1 // pred_check
      _
    $region19: #{gnn_forward.1} parent=1 // pred_check_branch
      %31 = sbr.rel (0) target = $region21
    $region20: #{gnn_forward.1} parent=1 // pred_region
      _
    $region21: #{gnn_forward.1} parent=1 // pred_fallthru
      _
    // Predicated region
    $region22: #{gnn_forward.1} parent=1 // pred_check
      _
    $region23: #{gnn_forward.1} parent=1 // pred_check_branch
      %33 = sbr.rel (0) target = $region25
    $region24: #{gnn_forward.1} parent=1 // pred_region
      %35 = dma.done [#allocation3], 512
    $region25: #{gnn_forward.1} parent=1 // pred_fallthru
      _
    %v37 = vld [vmem:[%s0] sm:$0xf]
    %v38 = vld [vmem:[%s0 + $0x4] sm:$0xf]
    %v39 = vld [vmem:[%s1] sm:$0xf]
    %v40 = vld [vmem:[%s1 + $0x4] sm:$0xf]
    %v41 = vld [vmem:[%s1 + $0x8] sm:$0xf]
    %v42 = vld [vmem:[%s1 + $0xc] sm:$0xf]
    %v43 = vld [vmem:[%s2] sm:$0x1]
    %v45 = vperm.slane %v43, 0
    %v49 = vunpack.c.l.b16 %v37
    %v50 = vunpack.c.l.b16 %v38
    %v51 = vpack.c.b16 %v50, %v49
    %v56 = vunpack.c.l.b16 %v39
    %v57 = vunpack.c.l.b16 %v40
    %v58 = vunpack.c.l.b16 %v41
    %v59 = vunpack.c.l.b16 %v42
    %v60 = vpack.c.b16 %v57, %v56
    %v61 = vpack.c.b16 %v59, %v58
    %vm64 = vcmask 261120
    %v66 = vsel %vm64, %v51, 0
    %68 = vmatpush.bf16.msra.mxu0 0
    %69 = vmatpush.bf16.msra.mxu0 0
    %70 = vmatpush.bf16.msra.mxu0 0
    %71 = vmatpush.bf16.msra.mxu0 0
    %72 = vmatpush.bf16.msra.mxu0 0
    %73 = vmatpush.bf16.msra.mxu0 0
    %74 = vmatpush.bf16.msra.mxu0 %v61
    %75 = vmatpush.bf16.msra.mxu0 %v60
    %76 = vmatmul.bf16.gmra.mxu0 %v66
    %v77 = vpop.f32.mrf.mxu0
    %v78 = vadd.f32 %v45, %v77
    %v79 = vpop.f32.mrf.mxu0
    %v80 = vadd.f32 %v45, %v79
    %81 = vdwg.mxu0
    %v82 = vmax.f32 %v78, 0.0
    %v83 = vmax.f32 %v80, 0.0
    %v84 = vpack.c.bf16 %v83, %v82
    %v85 = vld [vmem:[#allocation2] sm:$0xf]
    %v86 = vld [vmem:[#allocation2 + $0x4] sm:$0xf]
    %v87 = vld [vmem:[#allocation2 + $0x8] sm:$0xf]
    %v88 = vld [vmem:[#allocation2 + $0xc] sm:$0xf]
    %v89 = vld [vmem:[#allocation2 + $0x10] sm:$0xf]
    %v90 = vld [vmem:[#allocation2 + $0x14] sm:$0xf]
    %v91 = vld [vmem:[#allocation2 + $0x18] sm:$0xf]
    %v92 = vld [vmem:[#allocation2 + $0x1c] sm:$0xf]
    %v93 = vld [vmem:[%s4] sm:$0x1]
    %v95 = vperm.slane %v93, 0
    %v105 = vunpack.c.l.b16 %v85
    %v106 = vunpack.c.l.b16 %v86
    %v107 = vunpack.c.l.b16 %v87
    %v108 = vunpack.c.l.b16 %v88
    %v109 = vunpack.c.l.b16 %v89
    %v110 = vunpack.c.l.b16 %v90
    %v111 = vunpack.c.l.b16 %v91
    %v112 = vunpack.c.l.b16 %v92
    %v113 = vpack.c.b16 %v106, %v105
    %v114 = vpack.c.b16 %v108, %v107
    %v115 = vpack.c.b16 %v110, %v109
    %v116 = vpack.c.b16 %v112, %v111
    %vm121 = vcmask 523264
    %v123 = vsel %vm121, %v84, 0
    %125 = vmatpush.bf16.msra.mxu0 0
    %126 = vmatpush.bf16.msra.mxu0 0
    %127 = vmatpush.bf16.msra.mxu0 0
    %128 = vmatpush.bf16.msra.mxu0 0
    %129 = vmatpush.bf16.msra.mxu0 %v116
    %130 = vmatpush.bf16.msra.mxu0 %v115
    %131 = vmatpush.bf16.msra.mxu0 %v114
    %132 = vmatpush.bf16.msra.mxu0 %v113
    %133 = vmatmul.bf16.gmra.mxu0 %v123
    %v134 = vpop.f32.mrf.mxu0
    %v135 = vadd.f32 %v95, %v134
    %v136 = vpop.f32.mrf.mxu0
    %v137 = vadd.f32 %v95, %v136
    %138 = vdwg.mxu0
    %v139 = vpack.c.bf16 %v135, %v135
    %v140 = vpack.c.bf16 %v137, %v137
    %141 = vst [vmem:[%s5] sm:$0xf] %v139
    %142 = vst [vmem:[%s5 + $0x4] sm:$0xf] %v140
    // Predicated region
    $region26: #{gnn_forward.1} parent=1 // pred_check
      _
    $region27: #{gnn_forward.1} parent=1 // pred_check_branch
      %144 = sbr.rel (0) target = $region29
    $region28: #{gnn_forward.1} parent=1 // pred_region
      _
    $region29: #{gnn_forward.1} parent=1 // pred_fallthru
      _
    // Predicated region
    $region30: #{gnn_forward.1} parent=1 // pred_check
      _
    $region31: #{gnn_forward.1} parent=1 // pred_check_branch
      %146 = sbr.rel (0) target = $region33
    $region32: #{gnn_forward.1} parent=1 // pred_region
      _
    $region33: #{gnn_forward.1} parent=1 // pred_fallthru
      _
    %147 = vsyncpa [#allocation3], 1

</llo_original>
